<compile_context>
chip_gen: v5e
topology: v5e:2x2
jax: 0.10.0
libtpu: 0.0.40
codegen_flags: <defaults>
</compile_context>

<pallas_src>
import jax
import jax.numpy as jnp
from jax.experimental import pallas as pl
from jax.experimental.pallas import tpu as pltpu


# ---------------- VMEM-budgeted tile selection ----------------

def _round_up(x, m):
    return (x + m - 1) // m * m


def _lane_pad(c):
    # A (rows, C) f32/bf16 block occupies round_up(C, 128) lanes in VMEM,
    # regardless of C — budget with the padded width, not the logical one.
    return _round_up(max(int(c), 1), 128)


def _hw_config():
    """Per-generation tiling budget; conservative default if detection fails."""
    kind = ""
    try:
        kind = jax.devices()[0].device_kind.lower()
    except Exception:
        pass
    if "v7" in kind:
        # 64 MiB physical VMEM, ~3.2 TB/s HBM: larger tiles amortize the
        # ~0.35 us fixed per-grid-step overhead; budget stays under 48 MiB.
        return {"budget": 44 << 20, "row_cap": 8192, "pos_cap": 8192,
                "vmem_limit": 48 << 20}
    # v5e / v6e (and unknown): roofline saturates by ~4096-row slabs; keep
    # headroom.  32 MiB scoped VMEM is safe (128 MiB physical on both).
    return {"budget": 22 << 20, "row_cap": 4096, "pos_cap": 4096,
            "vmem_limit": 32 << 20}


def _pick_rows(m, per_row_bytes, budget, cap):
    """Largest row tile whose (lane-padded, double-buffered) working set fits."""
    limit = max(8, budget // max(1, per_row_bytes))
    limit = max(8, (min(cap, limit) // 8) * 8)
    return m if m <= limit else limit


def _pick_square_tile(l, per_pos_bytes, budget, pos_cap):
    """Largest square (tb, tb) pair tile, tb multiple of 8, within budget."""
    limit_pos = min(pos_cap, max(64, budget // max(1, per_pos_bytes)))
    tb = int(limit_pos ** 0.5)
    tb = max(8, (tb // 8) * 8)
    return l if l <= tb else tb


# ---------------- Pallas kernels ----------------

def _linear_kernel(x_ref, w_ref, b_ref, o_ref):
    # x: (tm, K), w: (K, N), b: (1, N) -> o: (tm, N)
    o_ref[...] = (
        jnp.dot(x_ref[...], w_ref[...], preferred_element_type=jnp.float32)
        + b_ref[...]
    ).astype(o_ref.dtype)


def _swap_leading2(x):
    # (a, b, c) -> (b, a, c); the lane (channel) dim is untouched, so this is a
    # sublane/major relayout only — no cross-lane transpose needed.
    if hasattr(pltpu, "einshape"):
        return pltpu.einshape("abc->bac", x)
    return jnp.swapaxes(x, 0, 1)


def _pair_kernel(x_ref, xt_ref, wd_ref, wp_ref, bd_ref, bp_ref, dist_ref, ptm_ref):
    # Fused to_dist + to_ptm on one (tb, tb, Cp) tile of rr_edge.
    #   x_ref  : rr_edge[b, rows_i, cols_j, :]
    #   xt_ref : rr_edge[b, rows_j, cols_i, :]  (swapped-index window of the SAME array)
    ti, tj, cp = x_ref.shape
    nd = dist_ref.shape[-1]
    npt = ptm_ref.shape[-1]

    x = x_ref[...]
    xt = _swap_leading2(xt_ref[...])            # -> aligned with x: x[b, cols, rows, :]^T

    x2 = x.reshape(ti * tj, cp)
    sym2 = (0.5 * (x + xt)).reshape(ti * tj, cp)

    dist = jnp.dot(sym2, wd_ref[...], preferred_element_type=jnp.float32) + bd_ref[...]
    ptm = jnp.dot(x2, wp_ref[...], preferred_element_type=jnp.float32) + bp_ref[...]

    dist_ref[...] = dist.reshape(ti, tj, nd).astype(dist_ref.dtype)
    ptm_ref[...] = ptm.reshape(ti, tj, npt).astype(ptm_ref.dtype)


# ---------------- wrappers ----------------

def _msa_linear(x2d, weight, bias, cfg):
    """out = x2d @ weight.T + bias, rows tiled over a 1-D parallel grid (no padding)."""
    m, k = x2d.shape
    n = weight.shape[0]
    wt = weight.T.astype(x2d.dtype)              # (K, N), tiny, resident across the grid
    b = bias.reshape(1, n).astype(jnp.float32)   # bias added in f32 after the f32 accumulate

    isz = jnp.dtype(x2d.dtype).itemsize
    # lane-padded input + output rows, x2 for double buffering
    per_row = 2 * (_lane_pad(k) + _lane_pad(n)) * isz
    tm = _pick_rows(m, per_row, cfg["budget"], cfg["row_cap"])

    # N=21 < 128 lanes -> masked vst on the output; known, secondary cost in an
    # HBM-bound regime (would only matter if a bundle dump showed vst dominating).
    return pl.pallas_call(
        _linear_kernel,
        out_shape=jax.ShapeDtypeStruct((m, n), x2d.dtype),
        grid=(pl.cdiv(m, tm),),
        in_specs=[
            pl.BlockSpec((tm, k), lambda i: (i, 0)),
            pl.BlockSpec((k, n), lambda i: (0, 0)),
            pl.BlockSpec((1, n), lambda i: (0, 0)),
        ],
        out_specs=pl.BlockSpec((tm, n), lambda i: (i, 0)),
        compiler_params=pltpu.CompilerParams(
            dimension_semantics=("parallel",),
            vmem_limit_bytes=cfg["vmem_limit"]),
    )(x2d, wt, b)


def _pair_fused(rr_edge, wd, bd, wp, bp, cfg):
    """Fused: dist = 0.5*(x + x^T_{L,L}) @ wd.T + bd ; ptm = x @ wp.T + bp.

    2-D block grid over the (L-row, L-col) axes; rr_edge is passed twice, the
    second BlockSpec with swapped block indices, so no transposed copy of the
    pair tensor is ever materialized in HBM.
    """
    B, L, L2, cp = rr_edge.shape
    nd = wd.shape[0]
    npt = wp.shape[0]
    wdt = wd.T.astype(rr_edge.dtype)
    wpt = wp.T.astype(rr_edge.dtype)
    bdr = bd.reshape(1, nd).astype(jnp.float32)
    bpr = bp.reshape(1, npt).astype(jnp.float32)

    isz = jnp.dtype(rr_edge.dtype).itemsize
    # Per (row, col) position: 2 input tiles (x, x^T window) + 2 output tiles,
    # each lane-padded, x2 for double buffering.
    per_pos = 2 * (2 * _lane_pad(cp) + _lane_pad(nd) + _lane_pad(npt)) * isz
    tb = _pick_square_tile(L, per_pos, cfg["budget"], cfg["pos_cap"])

    grid = (B, pl.cdiv(L, tb), pl.cdiv(L, tb))

    dist, ptm = pl.pallas_call(
        _pair_kernel,
        out_shape=(
            jax.ShapeDtypeStruct((B, L, L2, nd), rr_edge.dtype),
            jax.ShapeDtypeStruct((B, L, L2, npt), rr_edge.dtype),
        ),
        grid=grid,
        in_specs=[
            # direct window: rr_edge[b, i-block, j-block, :]
            pl.BlockSpec((None, tb, tb, cp), lambda b, i, j: (b, i, j, 0)),
            # transposed window of the SAME array: rr_edge[b, j-block, i-block, :]
            pl.BlockSpec((None, tb, tb, cp), lambda b, i, j: (b, j, i, 0)),
            pl.BlockSpec((cp, nd), lambda b, i, j: (0, 0)),
            pl.BlockSpec((cp, npt), lambda b, i, j: (0, 0)),
            pl.BlockSpec((1, nd), lambda b, i, j: (0, 0)),
            pl.BlockSpec((1, npt), lambda b, i, j: (0, 0)),
        ],
        out_specs=(
            pl.BlockSpec((None, tb, tb, nd), lambda b, i, j: (b, i, j, 0)),
            pl.BlockSpec((None, tb, tb, npt), lambda b, i, j: (b, i, j, 0)),
        ),
        compiler_params=pltpu.CompilerParams(
            dimension_semantics=("parallel", "parallel", "parallel"),
            vmem_limit_bytes=cfg["vmem_limit"]),
    )(rr_edge, rr_edge, wdt, wpt, bdr, bpr)
    return dist, ptm


def init_params(key, msa_channels=32, pair_channels=32):
    # Module __init__ sets all three Linear weights to 0; biases keep the
    # default PyTorch Linear init U(-1/sqrt(fan_in), 1/sqrt(fan_in)).
    k1, k2, k3 = jax.random.split(key, 3)

    def bias(k, fan_in, n):
        bound = 1.0 / (fan_in ** 0.5)
        return jax.random.uniform(k, (n,), jnp.float32, -bound, bound)

    return {
        "to_dist_w": jnp.zeros((64, pair_channels), jnp.float32),
        "to_dist_b": bias(k1, pair_channels, 64),
        "to_msa_w": jnp.zeros((21, msa_channels), jnp.float32),
        "to_msa_b": bias(k2, msa_channels, 21),
        "to_ptm_w": jnp.zeros((64, pair_channels), jnp.float32),
        "to_ptm_b": bias(k3, pair_channels, 64),
    }


def output_layer(params, msa, rr_edge):
    """Forward pass of OutputLayer. Returns (distance, msa_logits, ptm).

    NOTE: weights are cast to the activation dtype and outputs are emitted in the
    activation dtype (PyTorch keeps f32 weights/outputs); exact for f32 inputs,
    a documented deviation for bf16 inference.
    """
    B, S, L, Cm = msa.shape
    cfg = _hw_config()

    # to_msa
    msa_out = _msa_linear(msa.reshape(-1, Cm),
                          params["to_msa_w"], params["to_msa_b"], cfg)
    msa_out = msa_out.reshape(B, S, L, -1)

    # TODO(synk): `symmetry` is not defined in the provided source; using the
    # standard trFold convention symmetry(x) = 0.5 * (x + x.transpose(1, 2)).
    # to_dist + to_ptm fused; the transpose is realized via a swapped index_map
    # inside the pallas_call (no extra HBM pass over the pair tensor).
    dist, ptm = _pair_fused(
        rr_edge,
        params["to_dist_w"], params["to_dist_b"],
        params["to_ptm_w"], params["to_ptm_b"], cfg)

    return dist, msa_out, ptm


# ---------------- pure-JAX reference for verification ----------------

def _ref(params, msa, rr_edge):
    msa_out = msa @ params["to_msa_w"].T + params["to_msa_b"]
    ptm = rr_edge @ params["to_ptm_w"].T + params["to_ptm_b"]
    sym = 0.5 * (rr_edge + jnp.swapaxes(rr_edge, 1, 2))
    dist = sym @ params["to_dist_w"].T + params["to_dist_b"]
    return dist, msa_out, ptm


if __name__ == "__main__":
    key = jax.random.PRNGKey(0)
    k_param, k_msa, k_pair, kw1, kw2, kw3 = jax.random.split(key, 6)

    B, S, L = 2, 4, 8
    MSA_CH, PAIR_CH = 32, 32

    params = init_params(k_param, MSA_CH, PAIR_CH)
    # The module zero-inits the weights (bias-only outputs). Swap in non-zero
    # weights for the numeric check so the MXU path is actually exercised.
    params["to_dist_w"] = 0.1 * jax.random.normal(kw1, (64, PAIR_CH), jnp.float32)
    params["to_msa_w"] = 0.1 * jax.random.normal(kw2, (21, MSA_CH), jnp.float32)
    params["to_ptm_w"] = 0.1 * jax.random.normal(kw3, (64, PAIR_CH), jnp.float32)

    msa = jax.random.normal(k_msa, (B, S, L, MSA_CH), jnp.float32)
    rr_edge = jax.random.normal(k_pair, (B, L, L, PAIR_CH), jnp.float32)

    fwd = jax.jit(output_layer)
    dist, msa_out, ptm = fwd(params, msa, rr_edge)
    jax.block_until_ready((dist, msa_out, ptm))

    r_dist, r_msa, r_ptm = _ref(params, msa, rr_edge)
    assert dist.shape == (B, L, L, 64)
    assert msa_out.shape == (B, S, L, 21)
    assert ptm.shape == (B, L, L, 64)
    assert jnp.allclose(dist, r_dist, atol=1e-5)
    assert jnp.allclose(msa_out, r_msa, atol=1e-5)
    assert jnp.allclose(ptm, r_ptm, atol=1e-5)

    # Also verify the module-faithful zero-weight init (bias-only path).
    params0 = init_params(k_param, MSA_CH, PAIR_CH)
    d0, m0, p0 = jax.jit(output_layer)(params0, msa, rr_edge)
    jax.block_until_ready((d0, m0, p0))
    rd0, rm0, rp0 = _ref(params0, msa, rr_edge)
    assert jnp.allclose(d0, rd0, atol=1e-5)
    assert jnp.allclose(m0, rm0, atol=1e-5)
    assert jnp.allclose(p0, rp0, atol=1e-5)

    print("KERNEL_OK")
</pallas_src>

<mosaic_0001>
module attributes {stable_mosaic.version = 11 : i64} {
  func.func @_linear_kernel(%arg0: i32, %arg1: memref<64x32xf32, #tpu.memory_space<vmem>>, %arg2: memref<32x21xf32, #tpu.memory_space<vmem>>, %arg3: memref<1x21xf32, #tpu.memory_space<vmem>>, %arg4: memref<64x21xf32, #tpu.memory_space<vmem>>) attributes {dimension_semantics = [#tpu.dimension_semantics<parallel>], iteration_bounds = array<i64: 1>, scalar_prefetch = 0 : i64, scratch_operands = 0 : i64, tpu.core_type = #tpu.core_type<tc>, window_params = [{transform_indices = @transform_0, window_bounds = array<i64: 64, 32>}, {pipeline_mode = #tpu.pipeline_mode<synchronous>, transform_indices = @transform_1, window_bounds = array<i64: 32, 21>}, {pipeline_mode = #tpu.pipeline_mode<synchronous>, transform_indices = @transform_2, window_bounds = array<i64: 1, 21>}, {transform_indices = @transform_3, window_bounds = array<i64: 64, 21>}]} {
    %c0 = arith.constant 0 : index
    %c0_0 = arith.constant 0 : index
    %0 = vector.load %arg1[%c0, %c0_0] : memref<64x32xf32, #tpu.memory_space<vmem>>, vector<64x32xf32>
    %c0_1 = arith.constant 0 : index
    %c0_2 = arith.constant 0 : index
    %1 = vector.load %arg2[%c0_1, %c0_2] : memref<32x21xf32, #tpu.memory_space<vmem>>, vector<32x21xf32>
    %cst = arith.constant dense<0.000000e+00> : vector<64x21xf32>
    %2 = tpu.matmul %0, %1, %cst {dimension_numbers = #tpu.dot_dimension_numbers<[1], [0], [0], [1], [0, 0, 1, 1], [], []>} : vector<64x32xf32>, vector<32x21xf32>, vector<64x21xf32> -> vector<64x21xf32>
    %c0_3 = arith.constant 0 : index
    %c0_4 = arith.constant 0 : index
    %3 = vector.load %arg3[%c0_3, %c0_4] : memref<1x21xf32, #tpu.memory_space<vmem>>, vector<1x21xf32>
    %4 = vector.broadcast %3 : vector<1x21xf32> to vector<64x21xf32>
    %5 = arith.addf %2, %4 : vector<64x21xf32>
    %c0_5 = arith.constant 0 : index
    %c0_6 = arith.constant 0 : index
    %6 = vector.load %arg4[%c0_5, %c0_6] : memref<64x21xf32, #tpu.memory_space<vmem>>, vector<64x21xf32>
    tpu.vector_store %arg4[%c0_5, %c0_6], %5 {strides = array<i32>} : memref<64x21xf32, #tpu.memory_space<vmem>>, vector<64x21xf32>,
    return
  }
  func.func @transform_0(%arg0: i32) -> (i32, i32) {
    %c0_i32 = arith.constant 0 : i32
    %c0_i32_0 = arith.constant 0 : i32
    return %arg0, %c0_i32 : i32, i32
  }
  func.func @transform_1(%arg0: i32) -> (i32, i32) {
    %c0_i32 = arith.constant 0 : i32
    %c0_i32_0 = arith.constant 0 : i32
    %c0_i32_1 = arith.constant 0 : i32
    return %c0_i32, %c0_i32_0 : i32, i32
  }
  func.func @transform_2(%arg0: i32) -> (i32, i32) {
    %c0_i32 = arith.constant 0 : i32
    %c0_i32_0 = arith.constant 0 : i32
    %c0_i32_1 = arith.constant 0 : i32
    return %c0_i32, %c0_i32_0 : i32, i32
  }
  func.func @transform_3(%arg0: i32) -> (i32, i32) {
    %c0_i32 = arith.constant 0 : i32
    %c0_i32_0 = arith.constant 0 : i32
    return %arg0, %c0_i32 : i32, i32
  }
}

module attributes {stable_mosaic.version = 11 : i64} {
  func.func @_pair_kernel(%arg0: i32, %arg1: i32, %arg2: i32, %arg3: memref<1x8x8x32xf32, #tpu.memory_space<vmem>>, %arg4: memref<1x8x8x32xf32, #tpu.memory_space<vmem>>, %arg5: memref<32x64xf32, #tpu.memory_space<vmem>>, %arg6: memref<32x64xf32, #tpu.memory_space<vmem>>, %arg7: memref<1x64xf32, #tpu.memory_space<vmem>>, %arg8: memref<1x64xf32, #tpu.memory_space<vmem>>, %arg9: memref<1x8x8x64xf32, #tpu.memory_space<vmem>>, %arg10: memref<1x8x8x64xf32, #tpu.memory_space<vmem>>) attributes {dimension_semantics = [#tpu.dimension_semantics<parallel>, #tpu.dimension_semantics<parallel>, #tpu.dimension_semantics<parallel>], iteration_bounds = array<i64: 2, 1, 1>, scalar_prefetch = 0 : i64, scratch_operands = 0 : i64, tpu.core_type = #tpu.core_type<tc>, window_params = [{transform_indices = @transform_0, window_bounds = array<i64: 1, 8, 8, 32>}, {transform_indices = @transform_1, window_bounds = array<i64: 1, 8, 8, 32>}, {pipeline_mode = #tpu.pipeline_mode<synchronous>, transform_indices = @transform_2, window_bounds = array<i64: 32, 64>}, {pipeline_mode = #tpu.pipeline_mode<synchronous>, transform_indices = @transform_3, window_bounds = array<i64: 32, 64>}, {pipeline_mode = #tpu.pipeline_mode<synchronous>, transform_indices = @transform_4, window_bounds = array<i64: 1, 64>}, {pipeline_mode = #tpu.pipeline_mode<synchronous>, transform_indices = @transform_5, window_bounds = array<i64: 1, 64>}, {transform_indices = @transform_6, window_bounds = array<i64: 1, 8, 8, 64>}, {transform_indices = @transform_7, window_bounds = array<i64: 1, 8, 8, 64>}]} {
    %c0 = arith.constant 0 : index
    %c0_0 = arith.constant 0 : index
    %c0_1 = arith.constant 0 : index
    %c0_2 = arith.constant 0 : index
    %0 = vector.load %arg3[%c0, %c0_0, %c0_1, %c0_2] : memref<1x8x8x32xf32, #tpu.memory_space<vmem>>, vector<1x8x8x32xf32>
    %1 = vector.shape_cast %0 : vector<1x8x8x32xf32> to vector<8x8x32xf32>
    %c0_3 = arith.constant 0 : index
    %c0_4 = arith.constant 0 : index
    %c0_5 = arith.constant 0 : index
    %c0_6 = arith.constant 0 : index
    %2 = vector.load %arg4[%c0_3, %c0_4, %c0_5, %c0_6] : memref<1x8x8x32xf32, #tpu.memory_space<vmem>>, vector<1x8x8x32xf32>
    %3 = vector.shape_cast %2 : vector<1x8x8x32xf32> to vector<8x8x32xf32>
    %4 = tpu.transpose %3, [1, 0, 2] : vector<8x8x32xf32> -> vector<8x8x32xf32>
    %5 = vector.shape_cast %1 : vector<8x8x32xf32> to vector<64x32xf32>
    %6 = arith.addf %1, %4 : vector<8x8x32xf32>
    %cst = arith.constant 5.000000e-01 : f32
    %7 = vector.broadcast %cst : f32 to vector<8x8x32xf32>
    %8 = arith.mulf %7, %6 : vector<8x8x32xf32>
    %9 = vector.shape_cast %8 : vector<8x8x32xf32> to vector<64x32xf32>
    %c0_7 = arith.constant 0 : index
    %c0_8 = arith.constant 0 : index
    %10 = vector.load %arg5[%c0_7, %c0_8] : memref<32x64xf32, #tpu.memory_space<vmem>>, vector<32x64xf32>
    %cst_9 = arith.constant dense<0.000000e+00> : vector<64x64xf32>
    %11 = tpu.matmul %9, %10, %cst_9 {dimension_numbers = #tpu.dot_dimension_numbers<[1], [0], [0], [1], [0, 0, 1, 1], [], []>} : vector<64x32xf32>, vector<32x64xf32>, vector<64x64xf32> -> vector<64x64xf32>
    %c0_10 = arith.constant 0 : index
    %c0_11 = arith.constant 0 : index
    %12 = vector.load %arg7[%c0_10, %c0_11] : memref<1x64xf32, #tpu.memory_space<vmem>>, vector<1x64xf32>
    %13 = vector.broadcast %12 : vector<1x64xf32> to vector<64x64xf32>
    %14 = arith.addf %11, %13 : vector<64x64xf32>
    %c0_12 = arith.constant 0 : index
    %c0_13 = arith.constant 0 : index
    %15 = vector.load %arg6[%c0_12, %c0_13] : memref<32x64xf32, #tpu.memory_space<vmem>>, vector<32x64xf32>
    %cst_14 = arith.constant dense<0.000000e+00> : vector<64x64xf32>
    %16 = tpu.matmul %5, %15, %cst_14 {dimension_numbers = #tpu.dot_dimension_numbers<[1], [0], [0], [1], [0, 0, 1, 1], [], []>} : vector<64x32xf32>, vector<32x64xf32>, vector<64x64xf32> -> vector<64x64xf32>
    %c0_15 = arith.constant 0 : index
    %c0_16 = arith.constant 0 : index
    %17 = vector.load %arg8[%c0_15, %c0_16] : memref<1x64xf32, #tpu.memory_space<vmem>>, vector<1x64xf32>
    %18 = vector.broadcast %17 : vector<1x64xf32> to vector<64x64xf32>
    %19 = arith.addf %16, %18 : vector<64x64xf32>
    %20 = vector.shape_cast %14 : vector<64x64xf32> to vector<8x8x64xf32>
    %c0_17 = arith.constant 0 : index
    %c0_18 = arith.constant 0 : index
    %c0_19 = arith.constant 0 : index
    %c0_20 = arith.constant 0 : index
    %21 = vector.load %arg9[%c0_17, %c0_18, %c0_19, %c0_20] : memref<1x8x8x64xf32, #tpu.memory_space<vmem>>, vector<1x8x8x64xf32>
    %22 = vector.shape_cast %21 : vector<1x8x8x64xf32> to vector<8x8x64xf32>
    %23 = vector.shape_cast %20 : vector<8x8x64xf32> to vector<1x8x8x64xf32>
    tpu.vector_store %arg9[%c0_17, %c0_18, %c0_19, %c0_20], %23 {strides = array<i32>} : memref<1x8x8x64xf32, #tpu.memory_space<vmem>>, vector<1x8x8x64xf32>,
    %24 = vector.shape_cast %19 : vector<64x64xf32> to vector<8x8x64xf32>
    %c0_21 = arith.constant 0 : index
    %c0_22 = arith.constant 0 : index
    %c0_23 = arith.constant 0 : index
    %c0_24 = arith.constant 0 : index
    %25 = vector.load %arg10[%c0_21, %c0_22, %c0_23, %c0_24] : memref<1x8x8x64xf32, #tpu.memory_space<vmem>>, vector<1x8x8x64xf32>
    %26 = vector.shape_cast %25 : vector<1x8x8x64xf32> to vector<8x8x64xf32>
    %27 = vector.shape_cast %24 : vector<8x8x64xf32> to vector<1x8x8x64xf32>
    tpu.vector_store %arg10[%c0_21, %c0_22, %c0_23, %c0_24], %27 {strides = array<i32>} : memref<1x8x8x64xf32, #tpu.memory_space<vmem>>, vector<1x8x8x64xf32>,
    return
  }
  func.func @transform_0(%arg0: i32, %arg1: i32, %arg2: i32) -> (i32, i32, i32, i32) {
    %c0_i32 = arith.constant 0 : i32
    %c0_i32_0 = arith.constant 0 : i32
    return %arg0, %arg1, %arg2, %c0_i32 : i32, i32, i32, i32
  }
  func.func @transform_1(%arg0: i32, %arg1: i32, %arg2: i32) -> (i32, i32, i32, i32) {
    %c0_i32 = arith.constant 0 : i32
    %c0_i32_0 = arith.constant 0 : i32
    return %arg0, %arg2, %arg1, %c0_i32 : i32, i32, i32, i32
  }
  func.func @transform_2(%arg0: i32, %arg1: i32, %arg2: i32) -> (i32, i32) {
    %c0_i32 = arith.constant 0 : i32
    %c0_i32_0 = arith.constant 0 : i32
    %c0_i32_1 = arith.constant 0 : i32
    return %c0_i32, %c0_i32_0 : i32, i32
  }
  func.func @transform_3(%arg0: i32, %arg1: i32, %arg2: i32) -> (i32, i32) {
    %c0_i32 = arith.constant 0 : i32
    %c0_i32_0 = arith.constant 0 : i32
    %c0_i32_1 = arith.constant 0 : i32
    return %c0_i32, %c0_i32_0 : i32, i32
  }
  func.func @transform_4(%arg0: i32, %arg1: i32, %arg2: i32) -> (i32, i32) {
    %c0_i32 = arith.constant 0 : i32
    %c0_i32_0 = arith.constant 0 : i32
    %c0_i32_1 = arith.constant 0 : i32
    return %c0_i32, %c0_i32_0 : i32, i32
  }
  func.func @transform_5(%arg0: i32, %arg1: i32, %arg2: i32) -> (i32, i32) {
    %c0_i32 = arith.constant 0 : i32
    %c0_i32_0 = arith.constant 0 : i32
    %c0_i32_1 = arith.constant 0 : i32
    return %c0_i32, %c0_i32_0 : i32, i32
  }
  func.func @transform_6(%arg0: i32, %arg1: i32, %arg2: i32) -> (i32, i32, i32, i32) {
    %c0_i32 = arith.constant 0 : i32
    %c0_i32_0 = arith.constant 0 : i32
    return %arg0, %arg1, %arg2, %c0_i32 : i32, i32, i32, i32
  }
  func.func @transform_7(%arg0: i32, %arg1: i32, %arg2: i32) -> (i32, i32, i32, i32) {
    %c0_i32 = arith.constant 0 : i32
    %c0_i32_0 = arith.constant 0 : i32
    return %arg0, %arg1, %arg2, %c0_i32 : i32, i32, i32, i32
  }
}

</mosaic_0001>

<llo_original>
// kernel: output_layer.2
$region0: #{output_layer.2}
  #allocation0 [shape = 'u32[]', space=smem, size = 0x4, offset = 0x4, fixed_abs, tag = 'smem constant byte address 0x4 - core index']
  #allocation1 [shape = 'u32[72,128]{1,0:T(1,128)}', space=vmem, size = 0x9000, scoped, tag = 'internal scratch']
  %s0 = inlined_call_operand.vmem [shape: f32[64,32], index: 0, kind: input, shape index: {}]
  %s1 = inlined_call_operand.vmem [shape: f32[32,21], index: 1, kind: input, shape index: {}]
  %s2 = inlined_call_operand.vmem [shape: f32[1,21], index: 2, kind: input, shape index: {}]
  %s3 = inlined_call_operand.hbm [shape: f32[64,21], index: 3, kind: output, shape index: {}]
  %s4 = sld [smem:[#allocation0]]
  $region22: #{output_layer.2} parent=0
    _
  %s6 = ssub.s32 1, %s4
  %s7 = scalar_select 0, %s6, %s4
  $region1: #{output_layer.2} parent=0
    #allocation2 [shape = 'u8[32768]{0}', space=vmem, size = 0x8000, scoped, tag = 'output window, operand 0, single buffered']
    #allocation3 [shape = 's32[1]{0}', space=sflag, size = 0x4, scoped, tag = 'scoped memory for output_layer.2']
    %8 = vsyncpa [#allocation3], 0
    // Predicated region
    $region2: #{output_layer.2} parent=1 // pred_check
      _
    $region3: #{output_layer.2} parent=1 // pred_check_branch
      %10 = sbr.rel (0) target = $region5
    $region4: #{output_layer.2} parent=1 // pred_region
      _
    $region5: #{output_layer.2} parent=1 // pred_fallthru
      _
    // Predicated region
    $region6: #{output_layer.2} parent=1 // pred_check
      _
    $region7: #{output_layer.2} parent=1 // pred_check_branch
      %12 = sbr.rel (0) target = $region9
    $region8: #{output_layer.2} parent=1 // pred_region
      _
    $region9: #{output_layer.2} parent=1 // pred_fallthru
      _
    // Predicated region
    $region10: #{output_layer.2} parent=1 // pred_check
      _
    $region11: #{output_layer.2} parent=1 // pred_check_branch
      %14 = sbr.rel (0) target = $region13
    $region12: #{output_layer.2} parent=1 // pred_region
      _
    $region13: #{output_layer.2} parent=1 // pred_fallthru
      _
    %v15 = vld [vmem:[%s0] sm:$0xff]
    %v16 = vld [vmem:[%s0 + $0x8] sm:$0xff]
    %v17 = vld [vmem:[%s0 + $0x10] sm:$0xff]
    %v18 = vld [vmem:[%s0 + $0x18] sm:$0xff]
    %v19 = vld [vmem:[%s0 + $0x20] sm:$0xff]
    %v20 = vld [vmem:[%s0 + $0x28] sm:$0xff]
    %v21 = vld [vmem:[%s0 + $0x30] sm:$0xff]
    %v22 = vld [vmem:[%s0 + $0x38] sm:$0xff]
    %v23 = vld [vmem:[%s1] sm:$0xff]
    %v24 = vld [vmem:[%s1 + $0x8] sm:$0xff]
    %v25 = vld [vmem:[%s1 + $0x10] sm:$0xff]
    %v26 = vld [vmem:[%s1 + $0x18] sm:$0xff]
    %v27 = vld [vmem:[%s2] sm:$0x1]
    %v29 = vperm.slane %v27, 0
    %vm31 = vcmask 261120
    %v33 = vsel %vm31, %v15, 0
    %v36 = vsel %vm31, %v16, 0
    %v39 = vsel %vm31, %v17, 0
    %v42 = vsel %vm31, %v18, 0
    %v45 = vsel %vm31, %v19, 0
    %v48 = vsel %vm31, %v20, 0
    %v51 = vsel %vm31, %v21, 0
    %v54 = vsel %vm31, %v22, 0
    %56 = vmatpush.msra.mxu0 0.0
    %57 = vmatpush.msra.mxu0 0.0
    %58 = vmatpush.msra.mxu0 0.0
    %59 = vmatpush.msra.mxu0 0.0
    %60 = vmatpush.msra.mxu0 0.0
    %61 = vmatpush.msra.mxu0 0.0
    %62 = vmatpush.msra.mxu0 0.0
    %63 = vmatpush.msra.mxu0 0.0
    %64 = vmatpush.msra.mxu0 0.0
    %65 = vmatpush.msra.mxu0 0.0
    %66 = vmatpush.msra.mxu0 0.0
    %67 = vmatpush.msra.mxu0 0.0
    %68 = vmatpush.msra.mxu0 %v26
    %69 = vmatpush.msra.mxu0 %v25
    %70 = vmatpush.msra.mxu0 %v24
    %71 = vmatpush.msra.mxu0 %v23
    %72 = vmatmul.f32.gmra.mxu0 %v33
    %v73 = vpop.f32.mrf.mxu0
    %v74 = vadd.f32 %v29, %v73
    %75 = vmatmul.f32.gmra.mxu0 %v36
    %v76 = vpop.f32.mrf.mxu0
    %v77 = vadd.f32 %v29, %v76
    %78 = vmatmul.f32.gmra.mxu0 %v39
    %v79 = vpop.f32.mrf.mxu0
    %v80 = vadd.f32 %v29, %v79
    %81 = vmatmul.f32.gmra.mxu0 %v42
    %v82 = vpop.f32.mrf.mxu0
    %v83 = vadd.f32 %v29, %v82
    %84 = vmatmul.f32.gmra.mxu0 %v45
    %v85 = vpop.f32.mrf.mxu0
    %v86 = vadd.f32 %v29, %v85
    %87 = vmatmul.f32.gmra.mxu0 %v48
    %v88 = vpop.f32.mrf.mxu0
    %v89 = vadd.f32 %v29, %v88
    %90 = vmatmul.f32.gmra.mxu0 %v51
    %v91 = vpop.f32.mrf.mxu0
    %v92 = vadd.f32 %v29, %v91
    %93 = vmatmul.f32.gmra.mxu0 %v54
    %v94 = vpop.f32.mrf.mxu0
    %v95 = vadd.f32 %v29, %v94
    %96 = vdwg.mxu0
    %vm97 = vcmask 171008
    %98 = vst.msk [vmem:[#allocation2] sm:$0xff] %vm97, %v74
    %99 = vst.msk [vmem:[#allocation2 + $0x8] sm:$0xff] %vm97, %v77
    %100 = vst.msk [vmem:[#allocation2 + $0x10] sm:$0xff] %vm97, %v80
    %101 = vst.msk [vmem:[#allocation2 + $0x18] sm:$0xff] %vm97, %v83
    %102 = vst.msk [vmem:[#allocation2 + $0x20] sm:$0xff] %vm97, %v86
    %103 = vst.msk [vmem:[#allocation2 + $0x28] sm:$0xff] %vm97, %v89
    %104 = vst.msk [vmem:[#allocation2 + $0x30] sm:$0xff] %vm97, %v92
    %105 = vst.msk [vmem:[#allocation2 + $0x38] sm:$0xff] %vm97, %v95
    // Predicated region
    $region14: #{output_layer.2} parent=1 // pred_check
      _
    $region15: #{output_layer.2} parent=1 // pred_check_branch
      %107 = sbr.rel (0) target = $region17
    $region16: #{output_layer.2} parent=1 // pred_region
      %109 = vsyncadd [#allocation3], 0
      %s110 = sshll.u32 [#allocation2], 4
      %s111 = int_to_ptr.vmem [resolvable:$true] %s110
      %s112 = sshll.u32 %s3, 4
      %s113 = int_to_ptr.hbm [resolvable:$true] %s112
      %118 = dma.vmem_to_hbm [thread:$0]  %s111, 1024, %s113, [#allocation3], 128, 128, 8
    $region17: #{output_layer.2} parent=1 // pred_fallthru
      _
    // Predicated region
    $region18: #{output_layer.2} parent=1 // pred_check
      _
    $region19: #{output_layer.2} parent=1 // pred_check_branch
      %120 = sbr.rel (0) target = $region21
    $region20: #{output_layer.2} parent=1 // pred_region
      %122 = dma.done [#allocation3], 1024
    $region21: #{output_layer.2} parent=1 // pred_fallthru
      _
    %123 = vsyncpa [#allocation3], 1

// kernel: output_layer.3
$region0: #{output_layer.3}
  #allocation0 [shape = 'u32[]', space=smem, size = 0x4, offset = 0x4, fixed_abs, tag = 'smem constant byte address 0x4 - core index']
  #allocation1 [shape = 'u32[72,128]{1,0:T(1,128)}', space=vmem, size = 0x9000, scoped, tag = 'internal scratch']
  %s0 = inlined_call_operand.hbm [shape: f32[2,8,8,32], index: 0, kind: input, shape index: {}, may-alias: {0,1}]
  %s1 = inlined_call_operand.hbm [shape: f32[2,8,8,32], index: 1, kind: input, shape index: {}, may-alias: {0,1}]
  %s2 = inlined_call_operand.hbm [shape: f32[32,64], index: 2, kind: input, shape index: {}]
  %s3 = inlined_call_operand.hbm [shape: f32[32,64], index: 3, kind: input, shape index: {}]
  %s4 = inlined_call_operand.vmem [shape: f32[1,64], index: 4, kind: input, shape index: {}]
  %s5 = inlined_call_operand.vmem [shape: f32[1,64], index: 5, kind: input, shape index: {}]
  %s6 = inlined_call_operand.hbm [shape: f32[2,8,8,64], index: 6, kind: output, shape index: {0}]
  %s7 = inlined_call_operand.hbm [shape: f32[2,8,8,64], index: 7, kind: output, shape index: {1}]
  %8 = xla_tuple %s6, %s7
  %s9 = sld [smem:[#allocation0]]
  $region81: #{output_layer.3} parent=0
    _
  %s11 = ssub.s32 1, %s9
  %s12 = scalar_select 0, %s11, %s9
  $region1: #{output_layer.3} parent=0
    #allocation2 [shape = 'u8[65536]{0}', space=vmem, size = 0x10000, scoped, tag = 'input window, operand 0']
    #allocation3 [shape = 's32[2]{0}', space=sflag, size = 0x8, scoped, tag = 'scoped memory for output_layer.3']
    #allocation4 [shape = 's32[2]{0}', space=sflag, size = 0x8, scoped, tag = 'scoped memory for output_layer.3']
    #allocation5 [shape = 'u8[65536]{0}', space=vmem, size = 0x10000, scoped, tag = 'input window, operand 1']
    #allocation6 [shape = 's32[2]{0}', space=sflag, size = 0x8, scoped, tag = 'scoped memory for output_layer.3']
    #allocation7 [shape = 'u8[16384]{0}', space=vmem, size = 0x4000, scoped, tag = 'input window, operand 2, single buffered']
    #allocation8 [shape = 'u8[16384]{0}', space=vmem, size = 0x4000, scoped, tag = 'input window, operand 3, single buffered']
    #allocation9 [shape = 's32[1]{0}', space=sflag, size = 0x4, scoped, tag = 'scoped memory for output_layer.3']
    #allocation10 [shape = 'u8[65536]{0}', space=vmem, size = 0x10000, scoped, tag = 'output window, operand 0']
    #allocation11 [shape = 'u8[65536]{0}', space=vmem, size = 0x10000, scoped, tag = 'output window, operand 1']
    #allocation12 [shape = 's32[2]{0}', space=sflag, size = 0x8, scoped, tag = 'scoped memory for output_layer.3']
    %13 = vsyncpa [#allocation3], 0
    %s14 = scalar_lea.sflag [#allocation3], 1
    %15 = vsyncpa %s14, 0
    %16 = vsyncpa [#allocation6], 0
    %s17 = scalar_lea.sflag [#allocation6], 1
    %18 = vsyncpa %s17, 0
    %19 = vsyncpa [#allocation9], 0
    %20 = vsyncpa [#allocation4], 0
    %s21 = scalar_lea.sflag [#allocation4], 1
    %22 = vsyncpa %s21, 0
    %23 = vsyncpa [#allocation12], 0
    %s24 = scalar_lea.sflag [#allocation12], 1
    %25 = vsyncpa %s24, 0
    loop: start=0, step=1, limit=4
    $region2: #{output_layer.3} parent=1 // loop_pre_header
      _
    $region3: #{output_layer.3} parent=1 // loop_header
      %s27 = sphi 0, %s31
      %p28 = scmp.ge.s32.totalorder %s27, 4
      %s34 = sphi 0, %s53
      %s35 = sphi 0, %s49
      %s36 = sphi 0, %s45
      %s37 = sphi 0, %s34
      %s38 = sphi 0, %s35
      %s39 = sphi 0, %s36
      %s40 = sphi 0, %s37
      %s41 = sphi 0, %s38
      %s42 = sphi 0, %s39
      %s60 = sphi 0, %s62
      %s63 = sphi 0, %s60
      %s64 = sphi 0, %s63
      %s80 = sphi 0, %s64
      %s90 = sphi 0, %s92
      %s93 = sphi 0, %s90
      %s94 = sphi 0, %s93
      %s110 = sphi 0, %s94
      %s114 = sphi 0, %s114
      %s116 = sphi 0, %s114
      %s117 = sphi 0, %s116
      %s131 = sphi 0, %s117
      %s135 = sphi 0, %s135
      %s137 = sphi 0, %s135
      %s138 = sphi 0, %s137
      %s152 = sphi 0, %s138
      %s156 = sphi 0, %s156
      %s158 = sphi 0, %s156
      %s159 = sphi 0, %s158
      %s173 = sphi 0, %s159
      %s177 = sphi 0, %s177
      %s179 = sphi 0, %s177
      %s180 = sphi 0, %s179
      %s194 = sphi 0, %s180
      %s204 = sphi 0, %s206
      %s207 = sphi 0, %s204
      %s208 = sphi 0, %s207
      %s224 = sphi 0, %s208
      %s234 = sphi 0, %s236
      %s237 = sphi 0, %s234
      %s238 = sphi 0, %s237
      %s254 = sphi 0, %s238
    $region4: #{output_layer.3} parent=1 // loop_header_branch
      %30 = sbr.rel (%p28) target = $region8
    $region5: #{output_layer.3} parent=1 // loop_body
      %s32 = ssub.s32 %s27, 1
      %s33 = ssub.s32 %s27, 2
      %s43 = sadd.s32 1, %s36
      %p44 = scmp.ge.s32.totalorder %s43, 1
      %s45 = scalar_select %p44, 0, %s43
      %s46 = sadd.s32 1, %s35
      %s47 = scalar_select %p44, %s46, %s35
      %p48 = scmp.ge.s32.totalorder %s47, 1
      %s49 = scalar_select %p48, 0, %s47
      %s50 = sadd.s32 1, %s34
      %s51 = scalar_select %p48, %s50, %s34
      %p52 = scmp.ge.s32.totalorder %s51, 2
      %s53 = scalar_select %p52, 0, %s51
      %s54 = ssub.s32 %s34, %s53
      %s55 = ssub.s32 %s35, %s49
      %s56 = sor.u32 %s54, %s55
      %s57 = ssub.s32 %s36, %s45
      %s58 = sor.u32 %s56, %s57
      %p59 = scmp.eq.s32.totalorder %s58, 0
      %s61 = sadd.s32 %s60, 1
      %s62 = scalar_select %p59, %s60, %s61
      %p65 = pneg %p59
      %p66 = scmp.eq.s32.totalorder %s27, 1
      %p67 = por %p65, %p66
      %p68 = scmp.ne.s32.totalorder %s60, %s63
      %p69 = scmp.eq.s32.totalorder %s27, 0
      %p70 = por %p68, %p69
      %p71 = scmp.ne.s32.totalorder %s60, %s63
      %p72 = scmp.eq.s32.totalorder %s32, 1
      %p73 = por %p71, %p72
      %p74 = scmp.ne.s32.totalorder %s63, %s64
      %p75 = scmp.eq.s32.totalorder %s32, 0
      %p76 = por %p74, %p75
      %p77 = scmp.ne.s32.totalorder %s63, %s64
      %p78 = scmp.eq.s32.totalorder %s33, 1
      %p79 = por %p77, %p78
      %p81 = scmp.ne.s32.totalorder %s64, %s80
      %p82 = scmp.eq.s32.totalorder %s33, 0
      %p83 = por %p81, %p82
      %s84 = ssub.s32 %s34, %s53
      %s85 = ssub.s32 %s36, %s45
      %s86 = sor.u32 %s84, %s85
      %s87 = ssub.s32 %s35, %s49
      %s88 = sor.u32 %s86, %s87
      %p89 = scmp.eq.s32.totalorder %s88, 0
      %s91 = sadd.s32 %s90, 1
      %s92 = scalar_select %p89, %s90, %s91
      %p95 = pneg %p89
      %p96 = scmp.eq.s32.totalorder %s27, 1
      %p97 = por %p95, %p96
      %p98 = scmp.ne.s32.totalorder %s90, %s93
      %p99 = scmp.eq.s32.totalorder %s27, 0
      %p100 = por %p98, %p99
      %p101 = scmp.ne.s32.totalorder %s90, %s93
      %p102 = scmp.eq.s32.totalorder %s32, 1
      %p103 = por %p101, %p102
      %p104 = scmp.ne.s32.totalorder %s93, %s94
      %p105 = scmp.eq.s32.totalorder %s32, 0
      %p106 = por %p104, %p105
      %p107 = scmp.ne.s32.totalorder %s93, %s94
      %p108 = scmp.eq.s32.totalorder %s33, 1
      %p109 = por %p107, %p108
      %p111 = scmp.ne.s32.totalorder %s94, %s110
      %p112 = scmp.eq.s32.totalorder %s33, 0
      %p113 = por %p111, %p112
      %s115 = sadd.s32 %s114, 1
      %p118 = scmp.eq.s32.totalorder %s27, 1
      %p119 = scmp.ne.s32.totalorder %s114, %s116
      %p120 = scmp.eq.s32.totalorder %s27, 0
      %p121 = por %p119, %p120
      %p122 = scmp.ne.s32.totalorder %s114, %s116
      %p123 = scmp.eq.s32.totalorder %s32, 1
      %p124 = por %p122, %p123
      %p125 = scmp.ne.s32.totalorder %s116, %s117
      %p126 = scmp.eq.s32.totalorder %s32, 0
      %p127 = por %p125, %p126
      %p128 = scmp.ne.s32.totalorder %s116, %s117
      %p129 = scmp.eq.s32.totalorder %s33, 1
      %p130 = por %p128, %p129
      %p132 = scmp.ne.s32.totalorder %s117, %s131
      %p133 = scmp.eq.s32.totalorder %s33, 0
      %p134 = por %p132, %p133
      %s136 = sadd.s32 %s135, 1
      %p139 = scmp.eq.s32.totalorder %s27, 1
      %p140 = scmp.ne.s32.totalorder %s135, %s137
      %p141 = scmp.eq.s32.totalorder %s27, 0
      %p142 = por %p140, %p141
      %p143 = scmp.ne.s32.totalorder %s135, %s137
      %p144 = scmp.eq.s32.totalorder %s32, 1
      %p145 = por %p143, %p144
      %p146 = scmp.ne.s32.totalorder %s137, %s138
      %p147 = scmp.eq.s32.totalorder %s32, 0
      %p148 = por %p146, %p147
      %p149 = scmp.ne.s32.totalorder %s137, %s138
      %p150 = scmp.eq.s32.totalorder %s33, 1
      %p151 = por %p149, %p150
      %p153 = scmp.ne.s32.totalorder %s138, %s152
      %p154 = scmp.eq.s32.totalorder %s33, 0
      %p155 = por %p153, %p154
      %s157 = sadd.s32 %s156, 1
      %p160 = scmp.eq.s32.totalorder %s27, 1
      %p161 = scmp.ne.s32.totalorder %s156, %s158
      %p162 = scmp.eq.s32.totalorder %s27, 0
      %p163 = por %p161, %p162
      %p164 = scmp.ne.s32.totalorder %s156, %s158
      %p165 = scmp.eq.s32.totalorder %s32, 1
      %p166 = por %p164, %p165
      %p167 = scmp.ne.s32.totalorder %s158, %s159
      %p168 = scmp.eq.s32.totalorder %s32, 0
      %p169 = por %p167, %p168
      %p170 = scmp.ne.s32.totalorder %s158, %s159
      %p171 = scmp.eq.s32.totalorder %s33, 1
      %p172 = por %p170, %p171
      %p174 = scmp.ne.s32.totalorder %s159, %s173
      %p175 = scmp.eq.s32.totalorder %s33, 0
      %p176 = por %p174, %p175
      %s178 = sadd.s32 %s177, 1
      %p181 = scmp.eq.s32.totalorder %s27, 1
      %p182 = scmp.ne.s32.totalorder %s177, %s179
      %p183 = scmp.eq.s32.totalorder %s27, 0
      %p184 = por %p182, %p183
      %p185 = scmp.ne.s32.totalorder %s177, %s179
      %p186 = scmp.eq.s32.totalorder %s32, 1
      %p187 = por %p185, %p186
      %p188 = scmp.ne.s32.totalorder %s179, %s180
      %p189 = scmp.eq.s32.totalorder %s32, 0
      %p190 = por %p188, %p189
      %p191 = scmp.ne.s32.totalorder %s179, %s180
      %p192 = scmp.eq.s32.totalorder %s33, 1
      %p193 = por %p191, %p192
      %p195 = scmp.ne.s32.totalorder %s180, %s194
      %p196 = scmp.eq.s32.totalorder %s33, 0
      %p197 = por %p195, %p196
      %s198 = ssub.s32 %s34, %s53
      %s199 = ssub.s32 %s35, %s49
      %s200 = sor.u32 %s198, %s199
      %s201 = ssub.s32 %s36, %s45
      %s202 = sor.u32 %s200, %s201
      %p203 = scmp.eq.s32.totalorder %s202, 0
      %s205 = sadd.s32 %s204, 1
      %s206 = scalar_select %p203, %s204, %s205
      %p209 = pneg %p203
      %p210 = scmp.eq.s32.totalorder %s27, 1
      %p211 = por %p209, %p210
      %p212 = scmp.ne.s32.totalorder %s204, %s207
      %p213 = scmp.eq.s32.totalorder %s27, 0
      %p214 = por %p212, %p213
      %p215 = scmp.ne.s32.totalorder %s204, %s207
      %p216 = scmp.eq.s32.totalorder %s32, 1
      %p217 = por %p215, %p216
      %p218 = scmp.ne.s32.totalorder %s207, %s208
      %p219 = scmp.eq.s32.totalorder %s32, 0
      %p220 = por %p218, %p219
      %p221 = scmp.ne.s32.totalorder %s207, %s208
      %p222 = scmp.eq.s32.totalorder %s33, 1
      %p223 = por %p221, %p222
      %p225 = scmp.ne.s32.totalorder %s208, %s224
      %p226 = scmp.eq.s32.totalorder %s33, 0
      %p227 = por %p225, %p226
      %s228 = ssub.s32 %s34, %s53
      %s229 = ssub.s32 %s35, %s49
      %s230 = sor.u32 %s228, %s229
      %s231 = ssub.s32 %s36, %s45
      %s232 = sor.u32 %s230, %s231
      %p233 = scmp.eq.s32.totalorder %s232, 0
      %s235 = sadd.s32 %s234, 1
      %s236 = scalar_select %p233, %s234, %s235
      %p239 = pneg %p233
      %p240 = scmp.eq.s32.totalorder %s27, 1
      %p241 = por %p239, %p240
      %p242 = scmp.ne.s32.totalorder %s234, %s237
      %p243 = scmp.eq.s32.totalorder %s27, 0
      %p244 = por %p242, %p243
      %p245 = scmp.ne.s32.totalorder %s234, %s237
      %p246 = scmp.eq.s32.totalorder %s32, 1
      %p247 = por %p245, %p246
      %p248 = scmp.ne.s32.totalorder %s237, %s238
      %p249 = scmp.eq.s32.totalorder %s32, 0
      %p250 = por %p248, %p249
      %p251 = scmp.ne.s32.totalorder %s237, %s238
      %p252 = scmp.eq.s32.totalorder %s33, 1
      %p253 = por %p251, %p252
      %p255 = scmp.ne.s32.totalorder %s238, %s254
      %p256 = scmp.eq.s32.totalorder %s33, 0
      %p257 = por %p255, %p256
      %p258 = scmp.le.s32.totalorder 1, %s27
      %p259 = scmp.lt.s32.totalorder %s27, 3
      %p260 = pnand %p258, %p259
      %p261 = pneg %p260
      // Predicated region
      $region9: #{output_layer.3} parent=5 // pred_check
        _
      $region10: #{output_layer.3} parent=5 // pred_check_branch
        %263 = sbr.rel (%p260) target = $region12
      $region11: #{output_layer.3} parent=5 // pred_region
        %s264 = ssub.s32 %s27, 1
        // Predicated region
        $region13: #{output_layer.3} parent=11 // pred_check
          %p265 = pneg %p127
        $region14: #{output_layer.3} parent=11 // pred_check_branch
          %267 = sbr.rel (%p265) target = $region16
        $region15: #{output_layer.3} parent=11 // pred_region
          %269 = vsyncadd [#allocation6], 0
          %s270 = sshll.u32 %s2, 4
          %s271 = int_to_ptr.hbm [resolvable:$true] %s270
          %s272 = sshll.u32 [#allocation7], 4
          %s273 = int_to_ptr.vmem [resolvable:$true] %s272
          %278 = dma.hbm_to_vmem [thread:$0]  %s271, 512, %s273, [#allocation6], 128, 128, 8
        $region16: #{output_layer.3} parent=11 // pred_fallthru
          _
        // Predicated region
        $region17: #{output_layer.3} parent=11 // pred_check
          %p279 = pneg %p148
        $region18: #{output_layer.3} parent=11 // pred_check_branch
          %281 = sbr.rel (%p279) target = $region20
        $region19: #{output_layer.3} parent=11 // pred_region
          %283 = vsyncadd [#allocation9], 0
          %s284 = sshll.u32 %s3, 4
          %s285 = int_to_ptr.hbm [resolvable:$true] %s284
          %s286 = sshll.u32 [#allocation8], 4
          %s287 = int_to_ptr.vmem [resolvable:$true] %s286
          %292 = dma.hbm_to_vmem [thread:$0]  %s285, 512, %s287, [#allocation9], 128, 128, 8
        $region20: #{output_layer.3} parent=11 // pred_fallthru
          _
        // Predicated region
        $region21: #{output_layer.3} parent=11 // pred_check
          %p293 = pneg %p169
        $region22: #{output_layer.3} parent=11 // pred_check_branch
          %295 = sbr.rel (%p293) target = $region24
        $region23: #{output_layer.3} parent=11 // pred_region
          _
        $region24: #{output_layer.3} parent=11 // pred_fallthru
          _
        // Predicated region
        $region25: #{output_layer.3} parent=11 // pred_check
          %p296 = pneg %p190
        $region26: #{output_layer.3} parent=11 // pred_check_branch
          %298 = sbr.rel (%p296) target = $region28
        $region27: #{output_layer.3} parent=11 // pred_region
          _
        $region28: #{output_layer.3} parent=11 // pred_fallthru
          _
      $region12: #{output_layer.3} parent=5 // pred_fallthru
        _
      %p299 = scmp.lt.s32.totalorder %s27, 2
      // Predicated region
      $region29: #{output_layer.3} parent=5 // pred_check
        %p300 = pneg %p299
      $region30: #{output_layer.3} parent=5 // pred_check_branch
        %302 = sbr.rel (%p300) target = $region32
      $region31: #{output_layer.3} parent=5 // pred_region
        // Predicated region
        $region33: #{output_layer.3} parent=31 // pred_check
          %p303 = pneg %p70
        $region34: #{output_layer.3} parent=31 // pred_check_branch
          %305 = sbr.rel (%p303) target = $region36
        $region35: #{output_layer.3} parent=31 // pred_region
          %s306 = sand.u32 %s60, 1
          %s307 = scalar_lea.sflag [#allocation3], %s306
          %s308 = sand.u32 %s60, 1
          %s309 = smul.addr %s308, 64
          %s310 = scalar_lea.vmem [#allocation2], %s309
          %s311 = smul.u32 8, %s35
          %313 = vsyncadd %s307, 0
          %s314 = sadd.s32 %s36, %s311
          %s315 = smul.addr %s34, 8
          %s316 = sadd.s32 %s314, %s315
          %s317 = smul.addr %s316, 8
          %s318 = scalar_lea.hbm %s0, %s317
          %s319 = sshll.u32 %s318, 4
          %s320 = int_to_ptr.hbm [resolvable:$true] %s319
          %s321 = sshll.u32 %s310, 4
          %s322 = int_to_ptr.vmem [resolvable:$true] %s321
          %327 = dma.hbm_to_vmem [thread:$0]  %s320, 1024, %s322, %s307, 128, 128, 8
        $region36: #{output_layer.3} parent=31 // pred_fallthru
          _
        // Predicated region
        $region37: #{output_layer.3} parent=31 // pred_check
          %p328 = pneg %p100
        $region38: #{output_layer.3} parent=31 // pred_check_branch
          %330 = sbr.rel (%p328) target = $region40
        $region39: #{output_layer.3} parent=31 // pred_region
          %s331 = sand.u32 %s27, 1
          %s332 = scalar_lea.sflag [#allocation6], %s331
          %s333 = sand.u32 %s90, 1
          %s334 = smul.addr %s333, 64
          %s335 = scalar_lea.vmem [#allocation5], %s334
          %s336 = smul.u32 8, %s36
          %338 = vsyncadd %s332, 0
          %s339 = sadd.s32 %s35, %s336
          %s340 = smul.addr %s34, 8
          %s341 = sadd.s32 %s339, %s340
          %s342 = smul.addr %s341, 8
          %s343 = scalar_lea.hbm %s1, %s342
          %s344 = sshll.u32 %s343, 4
          %s345 = int_to_ptr.hbm [resolvable:$true] %s344
          %s346 = sshll.u32 %s335, 4
          %s347 = int_to_ptr.vmem [resolvable:$true] %s346
          %352 = dma.hbm_to_vmem [thread:$0]  %s345, 1024, %s347, %s332, 128, 128, 8
        $region40: #{output_layer.3} parent=31 // pred_fallthru
          _
      $region32: #{output_layer.3} parent=5 // pred_fallthru
        _
      %p353 = scmp.le.s32.totalorder 1, %s27
      %p354 = scmp.lt.s32.totalorder %s27, 3
      %p355 = pnand %p353, %p354
      %p356 = pneg %p355
      // Predicated region
      $region41: #{output_layer.3} parent=5 // pred_check
        _
      $region42: #{output_layer.3} parent=5 // pred_check_branch
        %358 = sbr.rel (%p355) target = $region44
      $region43: #{output_layer.3} parent=5 // pred_region
        %s359 = ssub.s32 %s27, 1
        %s360 = sand.u32 %s63, 1
        %s361 = scalar_lea.sflag [#allocation3], %s360
        %s362 = sand.u32 %s63, 1
        %s363 = smul.addr %s362, 64
        %s364 = scalar_lea.vmem [#allocation2], %s363
        // Predicated region
        $region45: #{output_layer.3} parent=43 // pred_check
          %p365 = pneg %p76
        $region46: #{output_layer.3} parent=43 // pred_check_branch
          %367 = sbr.rel (%p365) target = $region48
        $region47: #{output_layer.3} parent=43 // pred_region
          %369 = dma.done %s361, 1024
        $region48: #{output_layer.3} parent=43 // pred_fallthru
          _
        %s370 = sand.u32 %s32, 1
        %s371 = scalar_lea.sflag [#allocation6], %s370
        %s372 = sand.u32 %s93, 1
        %s373 = smul.addr %s372, 64
        %s374 = scalar_lea.vmem [#allocation5], %s373
        // Predicated region
        $region49: #{output_layer.3} parent=43 // pred_check
          %p375 = pneg %p106
        $region50: #{output_layer.3} parent=43 // pred_check_branch
          %377 = sbr.rel (%p375) target = $region52
        $region51: #{output_layer.3} parent=43 // pred_region
          %379 = dma.done %s371, 1024
        $region52: #{output_layer.3} parent=43 // pred_fallthru
          _
        // Predicated region
        $region53: #{output_layer.3} parent=43 // pred_check
          %p380 = pneg %p127
        $region54: #{output_layer.3} parent=43 // pred_check_branch
          %382 = sbr.rel (%p380) target = $region56
        $region55: #{output_layer.3} parent=43 // pred_region
          %384 = dma.done [#allocation6], 512
        $region56: #{output_layer.3} parent=43 // pred_fallthru
          _
        // Predicated region
        $region57: #{output_layer.3} parent=43 // pred_check
          %p385 = pneg %p148
        $region58: #{output_layer.3} parent=43 // pred_check_branch
          %387 = sbr.rel (%p385) target = $region60
        $region59: #{output_layer.3} parent=43 // pred_region
          %389 = dma.done [#allocation9], 512
        $region60: #{output_layer.3} parent=43 // pred_fallthru
          _
        %s390 = sand.u32 %s63, 1
        %s391 = scalar_lea.sflag [#allocation3], %s390
        %s392 = sand.u32 %s63, 1
        %s393 = smul.addr %s392, 64
        %s394 = scalar_lea.vmem [#allocation2], %s393
        %p395 = pneg %p76
        %p396 = pneg %p73
        %s397 = sand.u32 %s32, 1
        %s398 = scalar_lea.sflag [#allocation6], %s397
        %s399 = sand.u32 %s93, 1
        %s400 = smul.addr %s399, 64
        %s401 = scalar_lea.vmem [#allocation5], %s400
        %p402 = pneg %p106
        %p403 = pneg %p103
        %p404 = pneg %p127
        %p405 = pneg %p124
        %p406 = pneg %p148
        %p407 = pneg %p145
        %p408 = pneg %p169
        %p409 = pneg %p166
        %p410 = pneg %p190
        %p411 = pneg %p187
        %p412 = pneg %p220
        %p413 = pneg %p217
        %s414 = sand.u32 %s207, 1
        %s415 = scalar_lea.sflag [#allocation4], %s414
        %s416 = sand.u32 %s207, 1
        %s417 = smul.addr %s416, 64
        %s418 = scalar_lea.vmem [#allocation10], %s417
        %p419 = pneg %p250
        %p420 = pneg %p247
        %s421 = sand.u32 %s237, 1
        %s422 = scalar_lea.sflag [#allocation12], %s421
        %s423 = sand.u32 %s237, 1
        %s424 = smul.addr %s423, 64
        %s425 = scalar_lea.vmem [#allocation11], %s424
        %s426 = smul.u32 8, %s38
        %s427 = smul.u32 8, %s39
        %s428 = smul.u32 8, %s38
        %s429 = smul.u32 8, %s38
        %v430 = vld [vmem:[%s364] sm:$0xff]
        %v431 = vld [vmem:[%s364 + $0x8] sm:$0xff]
        %v432 = vld [vmem:[%s364 + $0x10] sm:$0xff]
        %v433 = vld [vmem:[%s364 + $0x18] sm:$0xff]
        %v434 = vld [vmem:[%s364 + $0x20] sm:$0xff]
        %v435 = vld [vmem:[%s364 + $0x28] sm:$0xff]
        %v436 = vld [vmem:[%s364 + $0x30] sm:$0xff]
        %v437 = vld [vmem:[%s364 + $0x38] sm:$0xff]
        %v438 = vld [vmem:[%s374] sm:$0xff]
        %v439 = vld [vmem:[%s374 + $0x8] sm:$0xff]
        %v440 = vld [vmem:[%s374 + $0x10] sm:$0xff]
        %v441 = vld [vmem:[%s374 + $0x18] sm:$0xff]
        %v442 = vld [vmem:[%s374 + $0x20] sm:$0xff]
        %v443 = vld [vmem:[%s374 + $0x28] sm:$0xff]
        %v444 = vld [vmem:[%s374 + $0x30] sm:$0xff]
        %v445 = vld [vmem:[%s374 + $0x38] sm:$0xff]
        %v446 = vrot.slane %v440, 4
        %vm447 = vcmask 1047556
        %v448 = vsel %vm447, %v446, %v438
        %v449 = vrot.slane %v438, 4
        %v450 = vsel %vm447, %v440, %v449
        %v452 = vunpack.c.l.s4 1983009808
        %v453 = vunpack.c.0.s8 %v452
        %v454 = vperm.slane %v448, %v453
        %v456 = vunpack.c.l.s4 1983009808
        %v457 = vunpack.c.0.s8 %v456
        %v458 = vperm.slane %v450, %v457
        %v459 = vrot.slane %v441, 4
        %v460 = vsel %vm447, %v459, %v439
        %v461 = vrot.slane %v439, 4
        %v462 = vsel %vm447, %v441, %v461
        %v464 = vunpack.c.l.s4 1983009808
        %v465 = vunpack.c.0.s8 %v464
        %v466 = vperm.slane %v460, %v465
        %v468 = vunpack.c.l.s4 1983009808
        %v469 = vunpack.c.0.s8 %v468
        %v470 = vperm.slane %v462, %v469
        %v471 = vrot.slane %v444, 4
        %v472 = vsel %vm447, %v471, %v442
        %v473 = vrot.slane %v442, 4
        %v474 = vsel %vm447, %v444, %v473
        %v476 = vunpack.c.l.s4 1983009808
        %v477 = vunpack.c.0.s8 %v476
        %v478 = vperm.slane %v472, %v477
        %v480 = vunpack.c.l.s4 1983009808
        %v481 = vunpack.c.0.s8 %v480
        %v482 = vperm.slane %v474, %v481
        %v483 = vrot.slane %v445, 4
        %v484 = vsel %vm447, %v483, %v443
        %v485 = vrot.slane %v443, 4
        %v486 = vsel %vm447, %v445, %v485
        %v488 = vunpack.c.l.s4 1983009808
        %v489 = vunpack.c.0.s8 %v488
        %v490 = vperm.slane %v484, %v489
        %v492 = vunpack.c.l.s4 1983009808
        %v493 = vunpack.c.0.s8 %v492
        %v494 = vperm.slane %v486, %v493
        %v495 = vrot.slane %v466, 4
        %v496 = vsel %vm447, %v495, %v454
        %v497 = vrot.slane %v454, 4
        %v498 = vsel %vm447, %v466, %v497
        %v500 = vunpack.c.l.s4 1934713408
        %v501 = vunpack.c.0.s8 %v500
        %v502 = vperm.slane %v496, %v501
        %v504 = vunpack.c.l.s4 1934713408
        %v505 = vunpack.c.0.s8 %v504
        %v506 = vperm.slane %v498, %v505
        %v507 = vrot.slane %v470, 4
        %v508 = vsel %vm447, %v507, %v458
        %v509 = vrot.slane %v458, 4
        %v510 = vsel %vm447, %v470, %v509
        %v512 = vunpack.c.l.s4 1934713408
        %v513 = vunpack.c.0.s8 %v512
        %v514 = vperm.slane %v508, %v513
        %v516 = vunpack.c.l.s4 1934713408
        %v517 = vunpack.c.0.s8 %v516
        %v518 = vperm.slane %v510, %v517
        %v519 = vrot.slane %v490, 4
        %v520 = vsel %vm447, %v519, %v478
        %v521 = vrot.slane %v478, 4
        %v522 = vsel %vm447, %v490, %v521
        %v524 = vunpack.c.l.s4 1934713408
        %v525 = vunpack.c.0.s8 %v524
        %v526 = vperm.slane %v520, %v525
        %v528 = vunpack.c.l.s4 1934713408
        %v529 = vunpack.c.0.s8 %v528
        %v530 = vperm.slane %v522, %v529
        %v531 = vrot.slane %v494, 4
        %v532 = vsel %vm447, %v531, %v482
        %v533 = vrot.slane %v482, 4
        %v534 = vsel %vm447, %v494, %v533
        %v536 = vunpack.c.l.s4 1934713408
        %v537 = vunpack.c.0.s8 %v536
        %v538 = vperm.slane %v532, %v537
        %v540 = vunpack.c.l.s4 1934713408
        %v541 = vunpack.c.0.s8 %v540
        %v542 = vperm.slane %v534, %v541
        %v543 = vrot.slane %v526, 4
        %v544 = vsel %vm447, %v543, %v502
        %v545 = vrot.slane %v502, 4
        %v546 = vsel %vm447, %v526, %v545
        %v547 = vrot.slane %v530, 4
        %v548 = vsel %vm447, %v547, %v506
        %v549 = vrot.slane %v506, 4
        %v550 = vsel %vm447, %v530, %v549
        %v551 = vrot.slane %v538, 4
        %v552 = vsel %vm447, %v551, %v514
        %v553 = vrot.slane %v514, 4
        %v554 = vsel %vm447, %v538, %v553
        %v555 = vrot.slane %v542, 4
        %v556 = vsel %vm447, %v555, %v518
        %v557 = vrot.slane %v518, 4
        %v558 = vsel %vm447, %v542, %v557
        %v559 = vadd.f32 %v430, %v544
        %v560 = vadd.f32 %v431, %v546
        %v561 = vadd.f32 %v432, %v548
        %v562 = vadd.f32 %v433, %v550
        %v563 = vadd.f32 %v434, %v552
        %v564 = vadd.f32 %v435, %v554
        %v565 = vadd.f32 %v436, %v556
        %v566 = vadd.f32 %v437, %v558
        %v567 = vmul.f32 %v559, 0.5
        %v568 = vmul.f32 %v560, 0.5
        %v569 = vmul.f32 %v561, 0.5
        %v570 = vmul.f32 %v562, 0.5
        %v571 = vmul.f32 %v563, 0.5
        %v572 = vmul.f32 %v564, 0.5
        %v573 = vmul.f32 %v565, 0.5
        %v574 = vmul.f32 %v566, 0.5
        %v575 = vld [vmem:[#allocation7] sm:$0xff]
        %v576 = vld [vmem:[#allocation7 + $0x8] sm:$0xff]
        %v577 = vld [vmem:[#allocation7 + $0x10] sm:$0xff]
        %v578 = vld [vmem:[#allocation7 + $0x18] sm:$0xff]
        %v579 = vld [vmem:[%s4] sm:$0x1]
        %v581 = vperm.slane %v579, 0
        %vm583 = vcmask 261120
        %v585 = vsel %vm583, %v567, 0
        %v588 = vsel %vm583, %v568, 0
        %v591 = vsel %vm583, %v569, 0
        %v594 = vsel %vm583, %v570, 0
        %v597 = vsel %vm583, %v571, 0
        %v600 = vsel %vm583, %v572, 0
        %v603 = vsel %vm583, %v573, 0
        %v606 = vsel %vm583, %v574, 0
        %608 = vmatpush.msra.mxu0 0.0
        %609 = vmatpush.msra.mxu0 0.0
        %610 = vmatpush.msra.mxu0 0.0
        %611 = vmatpush.msra.mxu0 0.0
        %612 = vmatpush.msra.mxu0 0.0
        %613 = vmatpush.msra.mxu0 0.0
        %614 = vmatpush.msra.mxu0 0.0
        %615 = vmatpush.msra.mxu0 0.0
        %616 = vmatpush.msra.mxu0 0.0
        %617 = vmatpush.msra.mxu0 0.0
        %618 = vmatpush.msra.mxu0 0.0
        %619 = vmatpush.msra.mxu0 0.0
        %620 = vmatpush.msra.mxu0 %v578
        %621 = vmatpush.msra.mxu0 %v577
        %622 = vmatpush.msra.mxu0 %v576
        %623 = vmatpush.msra.mxu0 %v575
        %624 = vmatmul.f32.gmra.mxu0 %v585
        %v625 = vpop.f32.mrf.mxu0
        %v626 = vadd.f32 %v581, %v625
        %627 = vmatmul.f32.gmra.mxu0 %v588
        %v628 = vpop.f32.mrf.mxu0
        %v629 = vadd.f32 %v581, %v628
        %630 = vmatmul.f32.gmra.mxu0 %v591
        %v631 = vpop.f32.mrf.mxu0
        %v632 = vadd.f32 %v581, %v631
        %633 = vmatmul.f32.gmra.mxu0 %v594
        %v634 = vpop.f32.mrf.mxu0
        %v635 = vadd.f32 %v581, %v634
        %636 = vmatmul.f32.gmra.mxu0 %v597
        %v637 = vpop.f32.mrf.mxu0
        %v638 = vadd.f32 %v581, %v637
        %639 = vmatmul.f32.gmra.mxu0 %v600
        %v640 = vpop.f32.mrf.mxu0
        %v641 = vadd.f32 %v581, %v640
        %642 = vmatmul.f32.gmra.mxu0 %v603
        %v643 = vpop.f32.mrf.mxu0
        %v644 = vadd.f32 %v581, %v643
        %645 = vmatmul.f32.gmra.mxu0 %v606
        %v646 = vpop.f32.mrf.mxu0
        %v647 = vadd.f32 %v581, %v646
        %648 = vdwg.mxu0
        %v649 = vld [vmem:[#allocation8] sm:$0xff]
        %v650 = vld [vmem:[#allocation8 + $0x8] sm:$0xff]
        %v651 = vld [vmem:[#allocation8 + $0x10] sm:$0xff]
        %v652 = vld [vmem:[#allocation8 + $0x18] sm:$0xff]
        %v653 = vld [vmem:[%s5] sm:$0x1]
        %v655 = vperm.slane %v653, 0
        %v658 = vsel %vm583, %v430, 0
        %v661 = vsel %vm583, %v431, 0
        %v664 = vsel %vm583, %v432, 0
        %v667 = vsel %vm583, %v433, 0
        %v670 = vsel %vm583, %v434, 0
        %v673 = vsel %vm583, %v435, 0
        %v676 = vsel %vm583, %v436, 0
        %v679 = vsel %vm583, %v437, 0
        %681 = vmatpush.msra.mxu0 0.0
        %682 = vmatpush.msra.mxu0 0.0
        %683 = vmatpush.msra.mxu0 0.0
        %684 = vmatpush.msra.mxu0 0.0
        %685 = vmatpush.msra.mxu0 0.0
        %686 = vmatpush.msra.mxu0 0.0
        %687 = vmatpush.msra.mxu0 0.0
        %688 = vmatpush.msra.mxu0 0.0
        %689 = vmatpush.msra.mxu0 0.0
        %690 = vmatpush.msra.mxu0 0.0
        %691 = vmatpush.msra.mxu0 0.0
        %692 = vmatpush.msra.mxu0 0.0
        %693 = vmatpush.msra.mxu0 %v652
        %694 = vmatpush.msra.mxu0 %v651
        %695 = vmatpush.msra.mxu0 %v650
        %696 = vmatpush.msra.mxu0 %v649
        %697 = vmatmul.f32.gmra.mxu0 %v658
        %v698 = vpop.f32.mrf.mxu0
        %v699 = vadd.f32 %v655, %v698
        %700 = vmatmul.f32.gmra.mxu0 %v661
        %v701 = vpop.f32.mrf.mxu0
        %v702 = vadd.f32 %v655, %v701
        %703 = vmatmul.f32.gmra.mxu0 %v664
        %v704 = vpop.f32.mrf.mxu0
        %v705 = vadd.f32 %v655, %v704
        %706 = vmatmul.f32.gmra.mxu0 %v667
        %v707 = vpop.f32.mrf.mxu0
        %v708 = vadd.f32 %v655, %v707
        %709 = vmatmul.f32.gmra.mxu0 %v670
        %v710 = vpop.f32.mrf.mxu0
        %v711 = vadd.f32 %v655, %v710
        %712 = vmatmul.f32.gmra.mxu0 %v673
        %v713 = vpop.f32.mrf.mxu0
        %v714 = vadd.f32 %v655, %v713
        %715 = vmatmul.f32.gmra.mxu0 %v676
        %v716 = vpop.f32.mrf.mxu0
        %v717 = vadd.f32 %v655, %v716
        %718 = vmatmul.f32.gmra.mxu0 %v679
        %v719 = vpop.f32.mrf.mxu0
        %v720 = vadd.f32 %v655, %v719
        %721 = vdwg.mxu0
        %vm722 = vcmask 523264
        %723 = vst.msk [vmem:[%s418] sm:$0xff] %vm722, %v626
        %724 = vst.msk [vmem:[%s418 + $0x8] sm:$0xff] %vm722, %v629
        %725 = vst.msk [vmem:[%s418 + $0x10] sm:$0xff] %vm722, %v632
        %726 = vst.msk [vmem:[%s418 + $0x18] sm:$0xff] %vm722, %v635
        %727 = vst.msk [vmem:[%s418 + $0x20] sm:$0xff] %vm722, %v638
        %728 = vst.msk [vmem:[%s418 + $0x28] sm:$0xff] %vm722, %v641
        %729 = vst.msk [vmem:[%s418 + $0x30] sm:$0xff] %vm722, %v644
        %730 = vst.msk [vmem:[%s418 + $0x38] sm:$0xff] %vm722, %v647
        %731 = vst.msk [vmem:[%s425] sm:$0xff] %vm722, %v699
        %732 = vst.msk [vmem:[%s425 + $0x8] sm:$0xff] %vm722, %v702
        %733 = vst.msk [vmem:[%s425 + $0x10] sm:$0xff] %vm722, %v705
        %734 = vst.msk [vmem:[%s425 + $0x18] sm:$0xff] %vm722, %v708
        %735 = vst.msk [vmem:[%s425 + $0x20] sm:$0xff] %vm722, %v711
        %736 = vst.msk [vmem:[%s425 + $0x28] sm:$0xff] %vm722, %v714
        %737 = vst.msk [vmem:[%s425 + $0x30] sm:$0xff] %vm722, %v717
        %738 = vst.msk [vmem:[%s425 + $0x38] sm:$0xff] %vm722, %v720
        %s739 = sand.u32 %s207, 1
        %s740 = scalar_lea.sflag [#allocation4], %s739
        %s741 = sand.u32 %s207, 1
        %s742 = smul.addr %s741, 64
        %s743 = scalar_lea.vmem [#allocation10], %s742
        %s744 = sand.u32 %s237, 1
        %s745 = scalar_lea.sflag [#allocation12], %s744
        %s746 = sand.u32 %s237, 1
        %s747 = smul.addr %s746, 64
        %s748 = scalar_lea.vmem [#allocation11], %s747
        // Predicated region
        $region61: #{output_layer.3} parent=43 // pred_check
          %p749 = pneg %p217
        $region62: #{output_layer.3} parent=43 // pred_check_branch
          %751 = sbr.rel (%p749) target = $region64
        $region63: #{output_layer.3} parent=43 // pred_region
          %s752 = smul.u32 8, %s38
          %754 = vsyncadd %s740, 0
          %s755 = sadd.s32 %s39, %s752
          %s756 = smul.addr %s37, 8
          %s757 = sadd.s32 %s755, %s756
          %s758 = smul.addr %s757, 8
          %s759 = scalar_lea.hbm %s6, %s758
          %s760 = sshll.u32 %s743, 4
          %s761 = int_to_ptr.vmem [resolvable:$true] %s760
          %s762 = sshll.u32 %s759, 4
          %s763 = int_to_ptr.hbm [resolvable:$true] %s762
          %768 = dma.vmem_to_hbm [thread:$0]  %s761, 1024, %s763, %s740, 128, 128, 8
        $region64: #{output_layer.3} parent=43 // pred_fallthru
          _
        // Predicated region
        $region65: #{output_layer.3} parent=43 // pred_check
          %p769 = pneg %p247
        $region66: #{output_layer.3} parent=43 // pred_check_branch
          %771 = sbr.rel (%p769) target = $region68
        $region67: #{output_layer.3} parent=43 // pred_region
          %s772 = smul.u32 8, %s38
          %774 = vsyncadd %s745, 0
          %s775 = sadd.s32 %s39, %s772
          %s776 = smul.addr %s37, 8
          %s777 = sadd.s32 %s775, %s776
          %s778 = smul.addr %s777, 8
          %s779 = scalar_lea.hbm %s7, %s778
          %s780 = sshll.u32 %s748, 4
          %s781 = int_to_ptr.vmem [resolvable:$true] %s780
          %s782 = sshll.u32 %s779, 4
          %s783 = int_to_ptr.hbm [resolvable:$true] %s782
          %788 = dma.vmem_to_hbm [thread:$0]  %s781, 1024, %s783, %s745, 128, 128, 8
        $region68: #{output_layer.3} parent=43 // pred_fallthru
          _
      $region44: #{output_layer.3} parent=5 // pred_fallthru
        _
      %p789 = scmp.le.s32.totalorder 2, %s27
      // Predicated region
      $region69: #{output_layer.3} parent=5 // pred_check
        %p790 = pneg %p789
      $region70: #{output_layer.3} parent=5 // pred_check_branch
        %792 = sbr.rel (%p790) target = $region72
      $region71: #{output_layer.3} parent=5 // pred_region
        %s793 = ssub.s32 %s27, 2
        // Predicated region
        $region73: #{output_layer.3} parent=71 // pred_check
          %p794 = pneg %p223
        $region74: #{output_layer.3} parent=71 // pred_check_branch
          %796 = sbr.rel (%p794) target = $region76
        $region75: #{output_layer.3} parent=71 // pred_region
          %s797 = sand.u32 %s208, 1
          %s798 = scalar_lea.sflag [#allocation4], %s797
          %s799 = sand.u32 %s208, 1
          %s800 = smul.addr %s799, 64
          %s801 = scalar_lea.vmem [#allocation10], %s800
          %803 = dma.done %s798, 1024
        $region76: #{output_layer.3} parent=71 // pred_fallthru
          _
        // Predicated region
        $region77: #{output_layer.3} parent=71 // pred_check
          %p804 = pneg %p253
        $region78: #{output_layer.3} parent=71 // pred_check_branch
          %806 = sbr.rel (%p804) target = $region80
        $region79: #{output_layer.3} parent=71 // pred_region
          %s807 = sand.u32 %s238, 1
          %s808 = scalar_lea.sflag [#allocation12], %s807
          %s809 = sand.u32 %s238, 1
          %s810 = smul.addr %s809, 64
          %s811 = scalar_lea.vmem [#allocation11], %s810
          %813 = dma.done %s808, 1024
        $region80: #{output_layer.3} parent=71 // pred_fallthru
          _
      $region72: #{output_layer.3} parent=5 // pred_fallthru
        _
    $region6: #{output_layer.3} parent=1 // loop_footer
      %s31 = sadd.s32 1, %s27
    $region7: #{output_layer.3} parent=1 // loop_footer_branch
      %26 = sbr.rel target = $region3
    $region8: #{output_layer.3} parent=1 // loop_exit
      _
    %814 = vsyncpa [#allocation3], 1
    %s815 = scalar_lea.sflag [#allocation3], 1
    %816 = vsyncpa %s815, 1
    %817 = vsyncpa [#allocation6], 1
    %s818 = scalar_lea.sflag [#allocation6], 1
    %819 = vsyncpa %s818, 1
    %820 = vsyncpa [#allocation9], 1
    %821 = vsyncpa [#allocation4], 1
    %s822 = scalar_lea.sflag [#allocation4], 1
    %823 = vsyncpa %s822, 1
    %824 = vsyncpa [#allocation12], 1
    %s825 = scalar_lea.sflag [#allocation12], 1
    %826 = vsyncpa %s825, 1

</llo_original>
